<compile_context>
chip_gen: v6e
topology: v6e:2x2x1
jax: 0.10.0
libtpu: 0.0.40
codegen_flags: <defaults>
</compile_context>

<pallas_src>
import jax
import jax.numpy as jnp
from jax import lax
from jax.experimental import pallas as pl
from jax.experimental.pallas import tpu as pltpu

EPS = 1e-5


def _round_up(v, m):
    return ((v + m - 1) // m) * m


# --------------------------------------------------------------------------- #
# Fused kernel: full (TC, HWp) channel rows resident in VMEM.
# --------------------------------------------------------------------------- #
def _main_fused_kernel(x_ref, m_ref, inv_ref, g1_ref, beta_ref, o_ref):
    # x_ref/o_ref : (TC, HWp)   m_ref : (1, HWp)   inv_ref : (1, 1)
    # g1_ref/beta_ref : (TC, 1) with g1 = 1 + gamma
    x = x_ref[...].astype(jnp.float32)
    m = m_ref[...].astype(jnp.float32)            # broadcasts over channels
    inv_num = inv_ref[...]                        # (1,1) f32 = 1/(sum(mask)+eps)

    # Exact two-pass stats (region + (1-m)*mu - mu == region - m*mu, any mask).
    region = m * x                                               # (TC, HWp)
    mu = jnp.sum(region, axis=-1, keepdims=True) * inv_num       # (TC, 1)
    diff = region - m * mu                                       # mask*(x-mu)
    var = jnp.sum(diff * diff, axis=-1, keepdims=True) * inv_num
    inv_std = lax.rsqrt(var + EPS)                               # EUP rsqrt

    # Fused epilogue: out = x + m*((x-mu)*inv_std*(1+gamma) + beta - x)
    a = inv_std * g1_ref[...]                                    # (TC, 1)
    b = beta_ref[...] - mu * a                                   # (TC, 1)
    o_ref[...] = (x + m * (x * (a - 1.0) + b)).astype(o_ref.dtype)


# --------------------------------------------------------------------------- #
# HW-streaming path: pass 1 accumulates per-channel sums over HW chunks.
# Sums are exact for arbitrary masks:
#   sum(m*x) -> mu ;  sum((m*x)^2), sum((m*x)*m), sum(m^2) -> var
# --------------------------------------------------------------------------- #
def _main_stats_kernel(x_ref, m_ref, s_mx_ref, s_mxx_ref, s_mmx_ref):
    # x_ref : (TC, HWC)   m_ref : (1, HWC)   s_*_ref : (TC, 1) f32 accumulators
    @pl.when(pl.program_id(2) == 0)
    def _():
        s_mx_ref[...] = jnp.zeros_like(s_mx_ref)
        s_mxx_ref[...] = jnp.zeros_like(s_mxx_ref)
        s_mmx_ref[...] = jnp.zeros_like(s_mmx_ref)

    x = x_ref[...].astype(jnp.float32)
    m = m_ref[...].astype(jnp.float32)
    region = m * x
    s_mx_ref[...] += jnp.sum(region, axis=-1, keepdims=True)
    s_mxx_ref[...] += jnp.sum(region * region, axis=-1, keepdims=True)
    s_mmx_ref[...] += jnp.sum(region * m, axis=-1, keepdims=True)


def _main_apply_kernel(x_ref, m_ref, ac_ref, bc_ref, o_ref):
    # out = x + m * (x*ac + bc);  ac = inv_std*(1+gamma) - 1,  bc = beta - mu*inv_std*(1+gamma)
    x = x_ref[...].astype(jnp.float32)
    m = m_ref[...].astype(jnp.float32)
    o_ref[...] = (x + m * (x * ac_ref[...] + bc_ref[...])).astype(o_ref.dtype)


def _vmem_limits():
    """Per-chip scoped-VMEM limit and per-step working-set budget."""
    try:
        cap = pltpu.get_tpu_info().vmem_capacity_bytes   # 128 MiB v5e/v6e, 64 MiB v7x
    except Exception:
        cap = 64 * 1024 * 1024
    vmem_limit = min(int(0.80 * cap), 100 * 1024 * 1024)
    step_budget = int(0.75 * vmem_limit)                 # compiler/pipeline headroom
    return vmem_limit, step_budget


def main_forward(x, mask, gamma, beta, *, force_hw_chunk=None):
    """Pallas implementation of MAIN.forward (masked/foreground instance norm)."""
    N, C, H, W = x.shape
    assert mask.ndim == 4 and mask.shape[0] == N and mask.shape[1] == 1

    # Nearest-neighbour resize of mask to x's spatial size (glue, not hot path).
    # TODO(synk): jax.image.resize(nearest) matches F.interpolate(mode='nearest')
    # only for integer scale factors; rounding conventions differ otherwise.
    mask_r = jax.image.resize(mask, (N, 1, H, W), method="nearest")

    HW = H * W
    HWp = _round_up(HW, 128)                       # lane-dense stores / reductions
    x_f = x.reshape(N, C, HW)
    m_f = mask_r.reshape(N, 1, HW).astype(x.dtype)  # channel-width 1 in HBM
    if HWp != HW:
        x_f = jnp.pad(x_f, ((0, 0), (0, 0), (0, HWp - HW)))
        m_f = jnp.pad(m_f, ((0, 0), (0, 0), (0, HWp - HW)))   # mask pad = 0 keeps sums exact

    # Per-batch mask statistics hoisted out of the kernels (review item).
    m32 = m_f.astype(jnp.float32)
    num = jnp.sum(m32, axis=-1)                    # (N, 1)
    inv_num = 1.0 / (num + EPS)                    # (N, 1)

    g1 = (1.0 + gamma).astype(jnp.float32)         # (C,)   precomputed 1+gamma
    bt = beta.astype(jnp.float32)                  # (C,)

    # ---- VMEM budget: double-buffered I/O tiles + ~5 live f32 intermediates ----
    xb = jnp.dtype(x.dtype).itemsize
    mb = jnp.dtype(m_f.dtype).itemsize
    vmem_limit, budget = _vmem_limits()
    per_row = HWp * (4 * xb + 5 * 4)               # 2x(x+out) bufs + f32 temps, per channel row
    fixed = 2 * 8 * HWp * mb + 4096                # (1,HWp) mask tile is sublane-padded to 8 rows
    tc_cap = (budget - fixed) // per_row if budget > fixed else 0

    use_fused = (force_hw_chunk is None) and (tc_cap >= min(C, 8))

    if use_fused:
        # ---- channel-tile selection ----
        if C <= tc_cap:
            tc = C
            target_steps = 8                       # ~4 steps per TensorCore (v7x: 2 TCs)
            if N < target_steps and C >= 16:
                want = -(-target_steps // N)       # tiles per batch item
                tc_split = max(8, ((-(-C // want)) // 8) * 8)
                tc = min(C, tc_split)
        else:
            tc = max(8, (int(tc_cap) // 8) * 8)
        Cp = _round_up(C, tc)                      # tc always divides the channel axis

        x_p, g1_p, bt_p = x_f, g1, bt
        if Cp != C:
            x_p = jnp.pad(x_f, ((0, 0), (0, Cp - C), (0, 0)))
            g1_p = jnp.pad(g1, (0, Cp - C), constant_values=1.0)
            bt_p = jnp.pad(bt, (0, Cp - C))
        g1_p = g1_p.reshape(Cp, 1)
        bt_p = bt_p.reshape(Cp, 1)
        inv3 = inv_num.reshape(N, 1, 1).astype(jnp.float32)

        grid = (N, Cp // tc)
        out = pl.pallas_call(
            _main_fused_kernel,
            out_shape=jax.ShapeDtypeStruct((N, Cp, HWp), x.dtype),
            grid_spec=pltpu.PrefetchScalarGridSpec(
                num_scalar_prefetch=0,
                grid=grid,
                in_specs=[
                    pl.BlockSpec((None, tc, HWp), lambda n, c: (n, c, 0)),   # x
                    pl.BlockSpec((None, 1, HWp), lambda n, c: (n, 0, 0)),    # mask (C=1)
                    pl.BlockSpec((None, 1, 1), lambda n, c: (n, 0, 0)),      # 1/(num+eps)
                    pl.BlockSpec((tc, 1), lambda n, c: (c, 0)),              # 1+gamma
                    pl.BlockSpec((tc, 1), lambda n, c: (c, 0)),              # beta
                ],
                out_specs=pl.BlockSpec((None, tc, HWp), lambda n, c: (n, c, 0)),
            ),
            compiler_params=pltpu.CompilerParams(
                dimension_semantics=("parallel", "parallel"),
                vmem_limit_bytes=vmem_limit,
            ),
        )(x_p, m_f, inv3, g1_p, bt_p)
        return out[:, :C, :HW].reshape(N, C, H, W)

    # ------------------------- HW-streaming path ---------------------------- #
    tcs = C if C <= 8 else 8
    Cp = _round_up(C, tcs)

    if force_hw_chunk is not None:
        hwc = _round_up(int(force_hw_chunk), 128)
    else:
        per_col = 128 * (4 * tcs * xb + 4 * tcs * 4 + 2 * 8 * mb)  # per 128 lanes
        ncol = max(1, budget // per_col)
        hwc = 128 * min(ncol, 16384 // 128)       # cap chunk at 16K lanes
    hwc = max(128, min(hwc, HWp))
    HWs = _round_up(HWp, hwc)

    x_p, m_p = x_f, m_f
    if HWs != HWp:
        x_p = jnp.pad(x_p, ((0, 0), (0, 0), (0, HWs - HWp)))
        m_p = jnp.pad(m_p, ((0, 0), (0, 0), (0, HWs - HWp)))
    g1_p, bt_p = g1, bt
    if Cp != C:
        x_p = jnp.pad(x_p, ((0, 0), (0, Cp - C), (0, 0)))
        g1_p = jnp.pad(g1, (0, Cp - C), constant_values=1.0)
        bt_p = jnp.pad(bt, (0, Cp - C))

    kc = HWs // hwc
    grid = (N, Cp // tcs, kc)

    stats = pl.pallas_call(
        _main_stats_kernel,
        out_shape=(jax.ShapeDtypeStruct((N, Cp, 1), jnp.float32),
                   jax.ShapeDtypeStruct((N, Cp, 1), jnp.float32),
                   jax.ShapeDtypeStruct((N, Cp, 1), jnp.float32)),
        grid_spec=pltpu.PrefetchScalarGridSpec(
            num_scalar_prefetch=0,
            grid=grid,
            in_specs=[
                pl.BlockSpec((None, tcs, hwc), lambda n, c, k: (n, c, k)),
                pl.BlockSpec((None, 1, hwc), lambda n, c, k: (n, 0, k)),
            ],
            out_specs=[
                pl.BlockSpec((None, tcs, 1), lambda n, c, k: (n, c, 0)),
                pl.BlockSpec((None, tcs, 1), lambda n, c, k: (n, c, 0)),
                pl.BlockSpec((None, tcs, 1), lambda n, c, k: (n, c, 0)),
            ],
        ),
        compiler_params=pltpu.CompilerParams(
            dimension_semantics=("parallel", "parallel", "arbitrary"),
            vmem_limit_bytes=vmem_limit,
        ),
    )(x_p, m_p)

    # Finalize per-channel affine coefficients in plain JAX (O(N*C) work).
    s_mx = stats[0][..., 0]                        # (N, Cp)  sum(m*x)
    s_mxx = stats[1][..., 0]                       # sum(m^2 * x^2)
    s_mmx = stats[2][..., 0]                       # sum(m^2 * x)
    m2 = jnp.sum(m32 * m32, axis=-1)               # (N, 1)   sum(m^2)
    mu = s_mx * inv_num
    var = (s_mxx - 2.0 * mu * s_mmx + mu * mu * m2) * inv_num
    var = jnp.maximum(var, 0.0)                    # guard tiny fp cancellation
    inv_std = lax.rsqrt(var + EPS)
    a = inv_std * g1_p[None, :]
    ac = (a - 1.0)[..., None].astype(jnp.float32)            # (N, Cp, 1)
    bc = (bt_p[None, :] - mu * a)[..., None].astype(jnp.float32)

    out = pl.pallas_call(
        _main_apply_kernel,
        out_shape=jax.ShapeDtypeStruct((N, Cp, HWs), x.dtype),
        grid_spec=pltpu.PrefetchScalarGridSpec(
            num_scalar_prefetch=0,
            grid=grid,
            in_specs=[
                pl.BlockSpec((None, tcs, hwc), lambda n, c, k: (n, c, k)),
                pl.BlockSpec((None, 1, hwc), lambda n, c, k: (n, 0, k)),
                pl.BlockSpec((None, tcs, 1), lambda n, c, k: (n, c, 0)),
                pl.BlockSpec((None, tcs, 1), lambda n, c, k: (n, c, 0)),
            ],
            out_specs=pl.BlockSpec((None, tcs, hwc), lambda n, c, k: (n, c, k)),
        ),
        compiler_params=pltpu.CompilerParams(
            dimension_semantics=("parallel", "parallel", "parallel"),
            vmem_limit_bytes=vmem_limit,
        ),
    )(x_p, m_p, ac, bc)
    return out[:, :C, :HW].reshape(N, C, H, W)


def _reference_forward(x, mask, gamma, beta):
    """Pure-JAX reference mirroring the PyTorch module, for verification."""
    N, C, H, W = x.shape
    mask = jax.image.resize(mask, (N, mask.shape[1], H, W), method="nearest")
    region = x * mask
    s = jnp.sum(region, axis=(2, 3))
    num = jnp.sum(jnp.broadcast_to(mask, x.shape), axis=(2, 3))
    mu = (s / (num + EPS))[:, :, None, None]
    var = jnp.sum((region + (1 - mask) * mu - mu) ** 2, axis=(2, 3)) / (num + EPS)
    std = jnp.sqrt(var[:, :, None, None] + EPS)
    normalized = (x - mu) / std
    fg = (normalized * (1 + gamma[None, :, None, None]) + beta[None, :, None, None]) * mask
    bg = x * (1 - mask)
    return fg + bg


if __name__ == "__main__":
    key = jax.random.PRNGKey(0)
    kx, km = jax.random.split(key)

    N, C, H, W = 2, 4, 16, 16
    x = jax.random.normal(kx, (N, C, H, W), dtype=jnp.float32)
    # binary mask at half resolution (gets nearest-upsampled to x's size)
    mask = (jax.random.uniform(km, (N, 1, H // 2, W // 2)) > 0.5).astype(jnp.float32)

    # Parameters: module __init__ uses zeros of shape (dims_in,)=(C,).
    # Small deterministic non-zero values to exercise the gamma/beta path.
    gamma = 0.1 * jnp.arange(C, dtype=jnp.float32)
    beta = -0.05 * jnp.arange(C, dtype=jnp.float32)

    ref = _reference_forward(x, mask, gamma, beta)

    # Fused (VMEM-resident) path.
    out = jax.block_until_ready(main_forward(x, mask, gamma, beta))
    assert out.shape == (N, C, H, W)
    assert jnp.allclose(out, ref, atol=1e-4, rtol=1e-4), "fused path mismatch vs reference"

    # Exercise the HW-streaming path at small shapes by forcing 128-lane chunks.
    out_s = jax.block_until_ready(main_forward(x, mask, gamma, beta, force_hw_chunk=128))
    assert jnp.allclose(out_s, ref, atol=1e-4, rtol=1e-4), "streamed path mismatch vs reference"

    print("KERNEL_OK")
</pallas_src>

<mosaic_0001>
module attributes {stable_mosaic.version = 11 : i64} {
  func.func @_main_fused_kernel(%arg0: i32, %arg1: i32, %arg2: memref<1x4x256xf32, #tpu.memory_space<vmem>>, %arg3: memref<1x1x256xf32, #tpu.memory_space<vmem>>, %arg4: memref<1x1x1xf32, #tpu.memory_space<vmem>>, %arg5: memref<4x1xf32, #tpu.memory_space<vmem>>, %arg6: memref<4x1xf32, #tpu.memory_space<vmem>>, %arg7: memref<1x4x256xf32, #tpu.memory_space<vmem>>) attributes {dimension_semantics = [#tpu.dimension_semantics<parallel>, #tpu.dimension_semantics<parallel>], iteration_bounds = array<i64: 2, 1>, scalar_prefetch = 0 : i64, scratch_operands = 0 : i64, tpu.core_type = #tpu.core_type<tc>, window_params = [{transform_indices = @transform_0, window_bounds = array<i64: 1, 4, 256>}, {transform_indices = @transform_1, window_bounds = array<i64: 1, 1, 256>}, {transform_indices = @transform_2, window_bounds = array<i64: 1, 1, 1>}, {transform_indices = @transform_3, window_bounds = array<i64: 4, 1>}, {transform_indices = @transform_4, window_bounds = array<i64: 4, 1>}, {transform_indices = @transform_5, window_bounds = array<i64: 1, 4, 256>}]} {
    %c0 = arith.constant 0 : index
    %c0_0 = arith.constant 0 : index
    %c0_1 = arith.constant 0 : index
    %0 = vector.load %arg2[%c0, %c0_0, %c0_1] : memref<1x4x256xf32, #tpu.memory_space<vmem>>, vector<1x4x256xf32>
    %1 = vector.shape_cast %0 : vector<1x4x256xf32> to vector<4x256xf32>
    %c0_2 = arith.constant 0 : index
    %c0_3 = arith.constant 0 : index
    %c0_4 = arith.constant 0 : index
    %2 = vector.load %arg3[%c0_2, %c0_3, %c0_4] : memref<1x1x256xf32, #tpu.memory_space<vmem>>, vector<1x1x256xf32>
    %3 = vector.shape_cast %2 : vector<1x1x256xf32> to vector<1x256xf32>
    %c0_5 = arith.constant 0 : index
    %c0_6 = arith.constant 0 : index
    %c0_7 = arith.constant 0 : index
    %4 = vector.load %arg4[%c0_5, %c0_6, %c0_7] : memref<1x1x1xf32, #tpu.memory_space<vmem>>, vector<1x1x1xf32>
    %5 = vector.shape_cast %4 : vector<1x1x1xf32> to vector<1x1xf32>
    %6 = vector.broadcast %3 : vector<1x256xf32> to vector<4x256xf32>
    %7 = arith.mulf %6, %1 : vector<4x256xf32>
    %cst = arith.constant dense<0.000000e+00> : vector<4xf32>
    %8 = vector.multi_reduction <add>, %7, %cst [1] : vector<4x256xf32> to vector<4xf32>
    %9 = vector.shape_cast %8 : vector<4xf32> to vector<4x1xf32>
    %10 = vector.broadcast %5 : vector<1x1xf32> to vector<4x1xf32>
    %11 = arith.mulf %9, %10 : vector<4x1xf32>
    %12 = vector.broadcast %3 : vector<1x256xf32> to vector<4x256xf32>
    %13 = vector.broadcast %11 : vector<4x1xf32> to vector<4x256xf32>
    %14 = arith.mulf %12, %13 : vector<4x256xf32>
    %15 = arith.subf %7, %14 : vector<4x256xf32>
    %16 = arith.mulf %15, %15 : vector<4x256xf32>
    %cst_8 = arith.constant dense<0.000000e+00> : vector<4xf32>
    %17 = vector.multi_reduction <add>, %16, %cst_8 [1] : vector<4x256xf32> to vector<4xf32>
    %18 = vector.shape_cast %17 : vector<4xf32> to vector<4x1xf32>
    %19 = vector.broadcast %5 : vector<1x1xf32> to vector<4x1xf32>
    %20 = arith.mulf %18, %19 : vector<4x1xf32>
    %cst_9 = arith.constant 9.99999974E-6 : f32
    %21 = vector.broadcast %cst_9 : f32 to vector<4x1xf32>
    %22 = arith.addf %20, %21 : vector<4x1xf32>
    %23 = math.rsqrt %22 : vector<4x1xf32>
    %c0_10 = arith.constant 0 : index
    %c0_11 = arith.constant 0 : index
    %24 = vector.load %arg5[%c0_10, %c0_11] : memref<4x1xf32, #tpu.memory_space<vmem>>, vector<4x1xf32>
    %25 = arith.mulf %23, %24 : vector<4x1xf32>
    %c0_12 = arith.constant 0 : index
    %c0_13 = arith.constant 0 : index
    %26 = vector.load %arg6[%c0_12, %c0_13] : memref<4x1xf32, #tpu.memory_space<vmem>>, vector<4x1xf32>
    %27 = arith.mulf %11, %25 : vector<4x1xf32>
    %28 = arith.subf %26, %27 : vector<4x1xf32>
    %cst_14 = arith.constant 1.000000e+00 : f32
    %29 = vector.broadcast %cst_14 : f32 to vector<4x1xf32>
    %30 = arith.subf %25, %29 : vector<4x1xf32>
    %31 = vector.broadcast %30 : vector<4x1xf32> to vector<4x256xf32>
    %32 = arith.mulf %1, %31 : vector<4x256xf32>
    %33 = vector.broadcast %28 : vector<4x1xf32> to vector<4x256xf32>
    %34 = arith.addf %32, %33 : vector<4x256xf32>
    %35 = vector.broadcast %3 : vector<1x256xf32> to vector<4x256xf32>
    %36 = arith.mulf %35, %34 : vector<4x256xf32>
    %37 = arith.addf %1, %36 : vector<4x256xf32>
    %c0_15 = arith.constant 0 : index
    %c0_16 = arith.constant 0 : index
    %c0_17 = arith.constant 0 : index
    %38 = vector.load %arg7[%c0_15, %c0_16, %c0_17] : memref<1x4x256xf32, #tpu.memory_space<vmem>>, vector<1x4x256xf32>
    %39 = vector.shape_cast %38 : vector<1x4x256xf32> to vector<4x256xf32>
    %40 = vector.shape_cast %37 : vector<4x256xf32> to vector<1x4x256xf32>
    tpu.vector_store %arg7[%c0_15, %c0_16, %c0_17], %40 {strides = array<i32>} : memref<1x4x256xf32, #tpu.memory_space<vmem>>, vector<1x4x256xf32>,
    return
  }
  func.func @transform_0(%arg0: i32, %arg1: i32) -> (i32, i32, i32) {
    %c0_i32 = arith.constant 0 : i32
    %c0_i32_0 = arith.constant 0 : i32
    return %arg0, %arg1, %c0_i32 : i32, i32, i32
  }
  func.func @transform_1(%arg0: i32, %arg1: i32) -> (i32, i32, i32) {
    %c0_i32 = arith.constant 0 : i32
    %c0_i32_0 = arith.constant 0 : i32
    %c0_i32_1 = arith.constant 0 : i32
    return %arg0, %c0_i32, %c0_i32_0 : i32, i32, i32
  }
  func.func @transform_2(%arg0: i32, %arg1: i32) -> (i32, i32, i32) {
    %c0_i32 = arith.constant 0 : i32
    %c0_i32_0 = arith.constant 0 : i32
    %c0_i32_1 = arith.constant 0 : i32
    return %arg0, %c0_i32, %c0_i32_0 : i32, i32, i32
  }
  func.func @transform_3(%arg0: i32, %arg1: i32) -> (i32, i32) {
    %c0_i32 = arith.constant 0 : i32
    %c0_i32_0 = arith.constant 0 : i32
    return %arg1, %c0_i32 : i32, i32
  }
  func.func @transform_4(%arg0: i32, %arg1: i32) -> (i32, i32) {
    %c0_i32 = arith.constant 0 : i32
    %c0_i32_0 = arith.constant 0 : i32
    return %arg1, %c0_i32 : i32, i32
  }
  func.func @transform_5(%arg0: i32, %arg1: i32) -> (i32, i32, i32) {
    %c0_i32 = arith.constant 0 : i32
    %c0_i32_0 = arith.constant 0 : i32
    return %arg0, %arg1, %c0_i32 : i32, i32, i32
  }
}

</mosaic_0001>

<llo_original>
// kernel: tpu_custom_call.1
$region0: #{tpu_custom_call.1}
  #allocation0 [shape = 'u32[]', space=smem, size = 0x4, offset = 0x4, fixed_abs, tag = 'smem constant byte address 0x4 - core index']
  #allocation1 [shape = 'u32[144,128]{1,0:T(1,128)}', space=vmem, size = 0x12000, scoped, tag = 'internal scratch']
  %s0 = inlined_call_operand.hbm [shape: f32[2,4,256], index: 0, kind: input, shape index: {}]
  %s1 = inlined_call_operand.vmem [shape: f32[2,1,256], index: 1, kind: input, shape index: {}]
  %s2 = inlined_call_operand.vmem [shape: f32[2,1,1], index: 2, kind: input, shape index: {}]
  %s3 = inlined_call_operand.vmem [shape: f32[4,1], index: 3, kind: input, shape index: {}]
  %s4 = inlined_call_operand.vmem [shape: f32[4,1], index: 4, kind: input, shape index: {}]
  %s5 = inlined_call_operand.hbm [shape: f32[2,4,256], index: 5, kind: output, shape index: {}]
  %s6 = sld [smem:[#allocation0]]
  $region57: #{tpu_custom_call.1} parent=0
    _
  %s8 = ssub.s32 1, %s6
  %s9 = scalar_select 0, %s8, %s6
  $region1: #{tpu_custom_call.1} parent=0
    #allocation2 [shape = 'u8[8192]{0}', space=vmem, size = 0x2000, scoped, tag = 'input window, operand 0']
    #allocation3 [shape = 's32[2]{0}', space=sflag, size = 0x8, scoped, tag = 'scoped memory for tpu_custom_call.1']
    #allocation4 [shape = 's32[2]{0}', space=sflag, size = 0x8, scoped, tag = 'scoped memory for tpu_custom_call.1']
    #allocation5 [shape = 'u8[8192]{0}', space=vmem, size = 0x2000, scoped, tag = 'output window, operand 0']
    %10 = vsyncpa [#allocation3], 0
    %s11 = scalar_lea.sflag [#allocation3], 1
    %12 = vsyncpa %s11, 0
    %13 = vsyncpa [#allocation4], 0
    %s14 = scalar_lea.sflag [#allocation4], 1
    %15 = vsyncpa %s14, 0
    loop: start=0, step=1, limit=4
    $region2: #{tpu_custom_call.1} parent=1 // loop_pre_header
      _
    $region3: #{tpu_custom_call.1} parent=1 // loop_header
      %s17 = sphi 0, %s21
      %p18 = scmp.ge.s32.totalorder %s17, 4
      %s24 = sphi 0, %s36
      %s25 = sphi 0, %s32
      %s26 = sphi 0, %s24
      %s27 = sphi 0, %s25
      %s28 = sphi 0, %s26
      %s29 = sphi 0, %s27
      %s41 = sphi 0, %s43
      %s44 = sphi 0, %s41
      %s45 = sphi 0, %s44
      %s61 = sphi 0, %s45
      %s67 = sphi 0, %s69
      %s70 = sphi 0, %s67
      %s71 = sphi 0, %s70
      %s87 = sphi 0, %s71
      %s93 = sphi 0, %s95
      %s96 = sphi 0, %s93
      %s97 = sphi 0, %s96
      %s113 = sphi 0, %s97
      %s119 = sphi 0, %s121
      %s122 = sphi 0, %s119
      %s123 = sphi 0, %s122
      %s139 = sphi 0, %s123
      %s145 = sphi 0, %s147
      %s148 = sphi 0, %s145
      %s149 = sphi 0, %s148
      %s165 = sphi 0, %s149
      %s173 = sphi 0, %s175
      %s176 = sphi 0, %s173
      %s177 = sphi 0, %s176
      %s193 = sphi 0, %s177
    $region4: #{tpu_custom_call.1} parent=1 // loop_header_branch
      %20 = sbr.rel (%p18) target = $region8
    $region5: #{tpu_custom_call.1} parent=1 // loop_body
      %s22 = ssub.s32 %s17, 1
      %s23 = ssub.s32 %s17, 2
      %s30 = sadd.s32 1, %s25
      %p31 = scmp.ge.s32.totalorder %s30, 1
      %s32 = scalar_select %p31, 0, %s30
      %s33 = sadd.s32 1, %s24
      %s34 = scalar_select %p31, %s33, %s24
      %p35 = scmp.ge.s32.totalorder %s34, 2
      %s36 = scalar_select %p35, 0, %s34
      %s37 = ssub.s32 %s24, %s36
      %s38 = ssub.s32 %s25, %s32
      %s39 = sor.u32 %s37, %s38
      %p40 = scmp.eq.s32.totalorder %s39, 0
      %s42 = sadd.s32 %s41, 1
      %s43 = scalar_select %p40, %s41, %s42
      %p46 = pneg %p40
      %p47 = scmp.eq.s32.totalorder %s17, 1
      %p48 = por %p46, %p47
      %p49 = scmp.ne.s32.totalorder %s41, %s44
      %p50 = scmp.eq.s32.totalorder %s17, 0
      %p51 = por %p49, %p50
      %p52 = scmp.ne.s32.totalorder %s41, %s44
      %p53 = scmp.eq.s32.totalorder %s22, 1
      %p54 = por %p52, %p53
      %p55 = scmp.ne.s32.totalorder %s44, %s45
      %p56 = scmp.eq.s32.totalorder %s22, 0
      %p57 = por %p55, %p56
      %p58 = scmp.ne.s32.totalorder %s44, %s45
      %p59 = scmp.eq.s32.totalorder %s23, 1
      %p60 = por %p58, %p59
      %p62 = scmp.ne.s32.totalorder %s45, %s61
      %p63 = scmp.eq.s32.totalorder %s23, 0
      %p64 = por %p62, %p63
      %s65 = ssub.s32 %s24, %s36
      %p66 = scmp.eq.s32.totalorder %s65, 0
      %s68 = sadd.s32 %s67, 1
      %s69 = scalar_select %p66, %s67, %s68
      %p72 = pneg %p66
      %p73 = scmp.eq.s32.totalorder %s17, 1
      %p74 = por %p72, %p73
      %p75 = scmp.ne.s32.totalorder %s67, %s70
      %p76 = scmp.eq.s32.totalorder %s17, 0
      %p77 = por %p75, %p76
      %p78 = scmp.ne.s32.totalorder %s67, %s70
      %p79 = scmp.eq.s32.totalorder %s22, 1
      %p80 = por %p78, %p79
      %p81 = scmp.ne.s32.totalorder %s70, %s71
      %p82 = scmp.eq.s32.totalorder %s22, 0
      %p83 = por %p81, %p82
      %p84 = scmp.ne.s32.totalorder %s70, %s71
      %p85 = scmp.eq.s32.totalorder %s23, 1
      %p86 = por %p84, %p85
      %p88 = scmp.ne.s32.totalorder %s71, %s87
      %p89 = scmp.eq.s32.totalorder %s23, 0
      %p90 = por %p88, %p89
      %s91 = ssub.s32 %s24, %s36
      %p92 = scmp.eq.s32.totalorder %s91, 0
      %s94 = sadd.s32 %s93, 1
      %s95 = scalar_select %p92, %s93, %s94
      %p98 = pneg %p92
      %p99 = scmp.eq.s32.totalorder %s17, 1
      %p100 = por %p98, %p99
      %p101 = scmp.ne.s32.totalorder %s93, %s96
      %p102 = scmp.eq.s32.totalorder %s17, 0
      %p103 = por %p101, %p102
      %p104 = scmp.ne.s32.totalorder %s93, %s96
      %p105 = scmp.eq.s32.totalorder %s22, 1
      %p106 = por %p104, %p105
      %p107 = scmp.ne.s32.totalorder %s96, %s97
      %p108 = scmp.eq.s32.totalorder %s22, 0
      %p109 = por %p107, %p108
      %p110 = scmp.ne.s32.totalorder %s96, %s97
      %p111 = scmp.eq.s32.totalorder %s23, 1
      %p112 = por %p110, %p111
      %p114 = scmp.ne.s32.totalorder %s97, %s113
      %p115 = scmp.eq.s32.totalorder %s23, 0
      %p116 = por %p114, %p115
      %s117 = ssub.s32 %s25, %s32
      %p118 = scmp.eq.s32.totalorder %s117, 0
      %s120 = sadd.s32 %s119, 1
      %s121 = scalar_select %p118, %s119, %s120
      %p124 = pneg %p118
      %p125 = scmp.eq.s32.totalorder %s17, 1
      %p126 = por %p124, %p125
      %p127 = scmp.ne.s32.totalorder %s119, %s122
      %p128 = scmp.eq.s32.totalorder %s17, 0
      %p129 = por %p127, %p128
      %p130 = scmp.ne.s32.totalorder %s119, %s122
      %p131 = scmp.eq.s32.totalorder %s22, 1
      %p132 = por %p130, %p131
      %p133 = scmp.ne.s32.totalorder %s122, %s123
      %p134 = scmp.eq.s32.totalorder %s22, 0
      %p135 = por %p133, %p134
      %p136 = scmp.ne.s32.totalorder %s122, %s123
      %p137 = scmp.eq.s32.totalorder %s23, 1
      %p138 = por %p136, %p137
      %p140 = scmp.ne.s32.totalorder %s123, %s139
      %p141 = scmp.eq.s32.totalorder %s23, 0
      %p142 = por %p140, %p141
      %s143 = ssub.s32 %s25, %s32
      %p144 = scmp.eq.s32.totalorder %s143, 0
      %s146 = sadd.s32 %s145, 1
      %s147 = scalar_select %p144, %s145, %s146
      %p150 = pneg %p144
      %p151 = scmp.eq.s32.totalorder %s17, 1
      %p152 = por %p150, %p151
      %p153 = scmp.ne.s32.totalorder %s145, %s148
      %p154 = scmp.eq.s32.totalorder %s17, 0
      %p155 = por %p153, %p154
      %p156 = scmp.ne.s32.totalorder %s145, %s148
      %p157 = scmp.eq.s32.totalorder %s22, 1
      %p158 = por %p156, %p157
      %p159 = scmp.ne.s32.totalorder %s148, %s149
      %p160 = scmp.eq.s32.totalorder %s22, 0
      %p161 = por %p159, %p160
      %p162 = scmp.ne.s32.totalorder %s148, %s149
      %p163 = scmp.eq.s32.totalorder %s23, 1
      %p164 = por %p162, %p163
      %p166 = scmp.ne.s32.totalorder %s149, %s165
      %p167 = scmp.eq.s32.totalorder %s23, 0
      %p168 = por %p166, %p167
      %s169 = ssub.s32 %s24, %s36
      %s170 = ssub.s32 %s25, %s32
      %s171 = sor.u32 %s169, %s170
      %p172 = scmp.eq.s32.totalorder %s171, 0
      %s174 = sadd.s32 %s173, 1
      %s175 = scalar_select %p172, %s173, %s174
      %p178 = pneg %p172
      %p179 = scmp.eq.s32.totalorder %s17, 1
      %p180 = por %p178, %p179
      %p181 = scmp.ne.s32.totalorder %s173, %s176
      %p182 = scmp.eq.s32.totalorder %s17, 0
      %p183 = por %p181, %p182
      %p184 = scmp.ne.s32.totalorder %s173, %s176
      %p185 = scmp.eq.s32.totalorder %s22, 1
      %p186 = por %p184, %p185
      %p187 = scmp.ne.s32.totalorder %s176, %s177
      %p188 = scmp.eq.s32.totalorder %s22, 0
      %p189 = por %p187, %p188
      %p190 = scmp.ne.s32.totalorder %s176, %s177
      %p191 = scmp.eq.s32.totalorder %s23, 1
      %p192 = por %p190, %p191
      %p194 = scmp.ne.s32.totalorder %s177, %s193
      %p195 = scmp.eq.s32.totalorder %s23, 0
      %p196 = por %p194, %p195
      %p197 = scmp.le.s32.totalorder 1, %s17
      %p198 = scmp.lt.s32.totalorder %s17, 3
      %p199 = pnand %p197, %p198
      %p200 = pneg %p199
      // Predicated region
      $region9: #{tpu_custom_call.1} parent=5 // pred_check
        _
      $region10: #{tpu_custom_call.1} parent=5 // pred_check_branch
        %202 = sbr.rel (%p199) target = $region12
      $region11: #{tpu_custom_call.1} parent=5 // pred_region
        %s203 = ssub.s32 %s17, 1
        // Predicated region
        $region13: #{tpu_custom_call.1} parent=11 // pred_check
          %p204 = pneg %p135
        $region14: #{tpu_custom_call.1} parent=11 // pred_check_branch
          %206 = sbr.rel (%p204) target = $region16
        $region15: #{tpu_custom_call.1} parent=11 // pred_region
          %p207 = scmp.lt.s32.totalorder %s27, 0
          %s208 = scalar_select %p207, %s27, 0
          %s209 = smul.addr %s208, 4
          %s210 = scalar_lea.vmem %s3, %s209
        $region16: #{tpu_custom_call.1} parent=11 // pred_fallthru
          _
        // Predicated region
        $region17: #{tpu_custom_call.1} parent=11 // pred_check
          %p211 = pneg %p161
        $region18: #{tpu_custom_call.1} parent=11 // pred_check_branch
          %213 = sbr.rel (%p211) target = $region20
        $region19: #{tpu_custom_call.1} parent=11 // pred_region
          %p214 = scmp.lt.s32.totalorder %s27, 0
          %s215 = scalar_select %p214, %s27, 0
          %s216 = smul.addr %s215, 4
          %s217 = scalar_lea.vmem %s4, %s216
        $region20: #{tpu_custom_call.1} parent=11 // pred_fallthru
          _
      $region12: #{tpu_custom_call.1} parent=5 // pred_fallthru
        _
      %p218 = scmp.lt.s32.totalorder %s17, 2
      // Predicated region
      $region21: #{tpu_custom_call.1} parent=5 // pred_check
        %p219 = pneg %p218
      $region22: #{tpu_custom_call.1} parent=5 // pred_check_branch
        %221 = sbr.rel (%p219) target = $region24
      $region23: #{tpu_custom_call.1} parent=5 // pred_region
        // Predicated region
        $region25: #{tpu_custom_call.1} parent=23 // pred_check
          %p222 = pneg %p51
        $region26: #{tpu_custom_call.1} parent=23 // pred_check_branch
          %224 = sbr.rel (%p222) target = $region28
        $region27: #{tpu_custom_call.1} parent=23 // pred_region
          %s225 = sand.u32 %s41, 1
          %s226 = scalar_lea.sflag [#allocation3], %s225
          %s227 = sand.u32 %s41, 1
          %s228 = smul.addr %s227, 8
          %s229 = scalar_lea.vmem [#allocation2], %s228
          %s231 = ssub.s32 128, 128
          %232 = vsyncadd %s226, %s231
          %s233 = smul.addr %s25, 2
          %s234 = smul.addr %s24, 2
          %s235 = sadd.s32 %s233, %s234
          %s236 = smul.addr %s235, 64
          %s237 = scalar_lea.hbm %s0, %s236
          %s239 = sshll.u32 %s229, 4
          %s240 = int_to_ptr.vmem [resolvable:$true] %s239
          %242 = dma.hbm_to_vmem [thread:$0]  %s237, 128, %s240, %s226
        $region28: #{tpu_custom_call.1} parent=23 // pred_fallthru
          _
        // Predicated region
        $region29: #{tpu_custom_call.1} parent=23 // pred_check
          %p243 = pneg %p77
        $region30: #{tpu_custom_call.1} parent=23 // pred_check_branch
          %245 = sbr.rel (%p243) target = $region32
        $region31: #{tpu_custom_call.1} parent=23 // pred_region
          %p246 = scmp.lt.s32.totalorder %s24, 1
          %s247 = scalar_select %p246, %s24, 1
          %s248 = smul.addr %s247, 2
          %s249 = scalar_lea.vmem %s1, %s248
        $region32: #{tpu_custom_call.1} parent=23 // pred_fallthru
          _
        // Predicated region
        $region33: #{tpu_custom_call.1} parent=23 // pred_check
          %p250 = pneg %p103
        $region34: #{tpu_custom_call.1} parent=23 // pred_check_branch
          %252 = sbr.rel (%p250) target = $region36
        $region35: #{tpu_custom_call.1} parent=23 // pred_region
          %p253 = scmp.lt.s32.totalorder %s24, 1
          %s254 = scalar_select %p253, %s24, 1
          %s255 = scalar_lea.vmem %s2, %s254
        $region36: #{tpu_custom_call.1} parent=23 // pred_fallthru
          _
      $region24: #{tpu_custom_call.1} parent=5 // pred_fallthru
        _
      %p256 = scmp.le.s32.totalorder 1, %s17
      %p257 = scmp.lt.s32.totalorder %s17, 3
      %p258 = pnand %p256, %p257
      %p259 = pneg %p258
      // Predicated region
      $region37: #{tpu_custom_call.1} parent=5 // pred_check
        _
      $region38: #{tpu_custom_call.1} parent=5 // pred_check_branch
        %261 = sbr.rel (%p258) target = $region40
      $region39: #{tpu_custom_call.1} parent=5 // pred_region
        %s262 = ssub.s32 %s17, 1
        %s263 = sand.u32 %s44, 1
        %s264 = scalar_lea.sflag [#allocation3], %s263
        %s265 = sand.u32 %s44, 1
        %s266 = smul.addr %s265, 8
        %s267 = scalar_lea.vmem [#allocation2], %s266
        // Predicated region
        $region41: #{tpu_custom_call.1} parent=39 // pred_check
          %p268 = pneg %p57
        $region42: #{tpu_custom_call.1} parent=39 // pred_check_branch
          %270 = sbr.rel (%p268) target = $region44
        $region43: #{tpu_custom_call.1} parent=39 // pred_region
          %271 = dma.done %s264, 128
        $region44: #{tpu_custom_call.1} parent=39 // pred_fallthru
          _
        %s272 = sand.u32 %s44, 1
        %s273 = scalar_lea.sflag [#allocation3], %s272
        %s274 = sand.u32 %s44, 1
        %s275 = smul.addr %s274, 8
        %s276 = scalar_lea.vmem [#allocation2], %s275
        %p277 = pneg %p57
        %p278 = pneg %p54
        %p279 = scmp.lt.s32.totalorder %s26, 1
        %s280 = scalar_select %p279, %s26, 1
        %s281 = smul.addr %s280, 2
        %s282 = scalar_lea.vmem %s1, %s281
        %p283 = pneg %p83
        %p284 = pneg %p80
        %p285 = scmp.lt.s32.totalorder %s26, 1
        %s286 = scalar_select %p285, %s26, 1
        %s287 = scalar_lea.vmem %s2, %s286
        %p288 = pneg %p109
        %p289 = pneg %p106
        %p290 = scmp.lt.s32.totalorder %s27, 0
        %s291 = scalar_select %p290, %s27, 0
        %s292 = smul.addr %s291, 4
        %s293 = scalar_lea.vmem %s3, %s292
        %p294 = pneg %p135
        %p295 = pneg %p132
        %p296 = scmp.lt.s32.totalorder %s27, 0
        %s297 = scalar_select %p296, %s27, 0
        %s298 = smul.addr %s297, 4
        %s299 = scalar_lea.vmem %s4, %s298
        %p300 = pneg %p161
        %p301 = pneg %p158
        %p302 = pneg %p189
        %p303 = pneg %p186
        %s304 = sand.u32 %s176, 1
        %s305 = scalar_lea.sflag [#allocation4], %s304
        %s306 = sand.u32 %s176, 1
        %s307 = smul.addr %s306, 8
        %s308 = scalar_lea.vmem [#allocation5], %s307
        %p309 = scmp.lt.s32.totalorder %s26, 1
        %s310 = scalar_select %p309, %s26, 1
        %s311 = smul.addr %s310, 2
        %s312 = scalar_lea.vmem %s1, %s311
        %p313 = scmp.lt.s32.totalorder %s26, 1
        %s314 = scalar_select %p313, %s26, 1
        %s315 = scalar_lea.vmem %s2, %s314
        %p316 = scmp.lt.s32.totalorder %s27, 0
        %s317 = scalar_select %p316, %s27, 0
        %s318 = smul.addr %s317, 4
        %s319 = scalar_lea.vmem %s3, %s318
        %p320 = scmp.lt.s32.totalorder %s27, 0
        %s321 = scalar_select %p320, %s27, 0
        %s322 = smul.addr %s321, 4
        %s323 = scalar_lea.vmem %s4, %s322
        %v324 = vld [vmem:[%s267] sm:$0xff]
        %v325 = vld [vmem:[%s312] sm:$0x3]
        %v326 = vld [vmem:[%s315] sm:$0x1]
        %v328 = vlaneseq
        %v329 = vshrl.u32 %v328, 7
        %v330 = vsub.s32 0, %v329
        %v331 = vrot.slane %v325, %v330
        %v332 = vlaneseq
        %v333 = vshrl.u32 %v332, 7
        %v334 = vsub.s32 1, %v333
        %v335 = vrot.slane %v325, %v334
        %v339 = vcombine.high %v324, %v324
        %v341 = vmul.f32 %v331, %v324
        %v342 = vmul.f32 %v335, %v339
        %vm343 = vcmask 1043456
        %v344 = vsel %vm343, %v341, 0.0
        %v345 = vsel %vm343, %v342, 0.0
        %v346 = vadd.f32 %v344, %v345
        %347 = vadd.xlane.f32.xlu0 %v346
        %v348 = vpop.xlane.xlu0 %347
        %v350 = vlaneseq
        %v351 = vshrl.u32 %v350, 7
        %v352 = vsub.s32 0, %v351
        %v353 = vrot.slane %v326, %v352
        %v355 = vmul.f32 %v348, %v353
        %357 = vset.pattern.permute.xlu0 0
        %358 = vperm.xlu0 %357, %v355
        %v359 = vpop.permute.xlu0 %358
        %v361 = vmul.f32 %v331, %v359
        %v362 = vmul.f32 %v335, %v359
        %v363 = vsub.f32 %v341, %v361
        %v364 = vsub.f32 %v342, %v362
        %v365 = vmul.f32 %v363, %v363
        %v366 = vmul.f32 %v364, %v364
        %v367 = vsel %vm343, %v365, 0.0
        %v368 = vsel %vm343, %v366, 0.0
        %v369 = vadd.f32 %v367, %v368
        %370 = vadd.xlane.f32.xlu0 %v369
        %v371 = vpop.xlane.xlu0 %370
        %v372 = vmul.f32 %v371, %v353
        %v373 = vadd.f32 %v372, 1e-05
        %v374 = vrsqrt.pop %v373
        %v375 = vld [vmem:[%s319] sm:$0xf]
        %v376 = vmul.f32 %v374, %v375
        %v377 = vld [vmem:[%s323] sm:$0xf]
        %v378 = vmul.f32 %v355, %v376
        %v379 = vsub.f32 %v377, %v378
        %v380 = vsub.f32 %v376, 1.0
        %382 = vset.pattern.permute.xlu0 0
        %383 = vperm.xlu0 %382, %v380
        %v384 = vpop.permute.xlu0 %383
        %v386 = vunpack.c.l.s4 839922192
        %v387 = vunpack.c.0.s8 %v386
        %v388 = vlaneseq
        %v389 = vshrl.u32 %v388, 7
        %v390 = vsub.s32 %v387, %v389
        %v391 = vrot.slane %v384, %v390
        %v393 = vmul.f32 %v324, %v391
        %395 = vset.pattern.permute.xlu0 0
        %396 = vperm.xlu0 %395, %v379
        %v397 = vpop.permute.xlu0 %396
        %v399 = vunpack.c.l.s4 839922192
        %v400 = vunpack.c.0.s8 %v399
        %v401 = vlaneseq
        %v402 = vshrl.u32 %v401, 7
        %v403 = vsub.s32 %v400, %v402
        %v404 = vrot.slane %v397, %v403
        %v406 = vadd.f32 %v393, %v404
        %v408 = vcombine.high %v406, %v406
        %v410 = vmul.f32 %v331, %v406
        %v411 = vmul.f32 %v335, %v408
        %v414 = vcombine.low %v410, %v411
        %v416 = vadd.f32 %v324, %v414
        %417 = vst [vmem:[%s308] sm:$0xff] %v416
        %s418 = sand.u32 %s176, 1
        %s419 = scalar_lea.sflag [#allocation4], %s418
        %s420 = sand.u32 %s176, 1
        %s421 = smul.addr %s420, 8
        %s422 = scalar_lea.vmem [#allocation5], %s421
        // Predicated region
        $region45: #{tpu_custom_call.1} parent=39 // pred_check
          %p423 = pneg %p186
        $region46: #{tpu_custom_call.1} parent=39 // pred_check_branch
          %425 = sbr.rel (%p423) target = $region48
        $region47: #{tpu_custom_call.1} parent=39 // pred_region
          %s427 = ssub.s32 128, 128
          %428 = vsyncadd %s419, %s427
          %s429 = smul.addr %s27, 2
          %s430 = smul.addr %s26, 2
          %s431 = sadd.s32 %s429, %s430
          %s432 = smul.addr %s431, 64
          %s433 = scalar_lea.hbm %s5, %s432
          %s435 = sshll.u32 %s422, 4
          %s436 = int_to_ptr.vmem [resolvable:$true] %s435
          %438 = dma.vmem_to_hbm [thread:$0]  %s436, 128, %s433, %s419
        $region48: #{tpu_custom_call.1} parent=39 // pred_fallthru
          _
      $region40: #{tpu_custom_call.1} parent=5 // pred_fallthru
        _
      %p439 = scmp.le.s32.totalorder 2, %s17
      // Predicated region
      $region49: #{tpu_custom_call.1} parent=5 // pred_check
        %p440 = pneg %p439
      $region50: #{tpu_custom_call.1} parent=5 // pred_check_branch
        %442 = sbr.rel (%p440) target = $region52
      $region51: #{tpu_custom_call.1} parent=5 // pred_region
        %s443 = ssub.s32 %s17, 2
        // Predicated region
        $region53: #{tpu_custom_call.1} parent=51 // pred_check
          %p444 = pneg %p192
        $region54: #{tpu_custom_call.1} parent=51 // pred_check_branch
          %446 = sbr.rel (%p444) target = $region56
        $region55: #{tpu_custom_call.1} parent=51 // pred_region
          %s447 = sand.u32 %s177, 1
          %s448 = scalar_lea.sflag [#allocation4], %s447
          %s449 = sand.u32 %s177, 1
          %s450 = smul.addr %s449, 8
          %s451 = scalar_lea.vmem [#allocation5], %s450
          %452 = dma.done %s448, 128
        $region56: #{tpu_custom_call.1} parent=51 // pred_fallthru
          _
      $region52: #{tpu_custom_call.1} parent=5 // pred_fallthru
        _
    $region6: #{tpu_custom_call.1} parent=1 // loop_footer
      %s21 = sadd.s32 1, %s17
    $region7: #{tpu_custom_call.1} parent=1 // loop_footer_branch
      %16 = sbr.rel target = $region3
    $region8: #{tpu_custom_call.1} parent=1 // loop_exit
      _
    %453 = vsyncpa [#allocation3], 1
    %s454 = scalar_lea.sflag [#allocation3], 1
    %455 = vsyncpa %s454, 1
    %456 = vsyncpa [#allocation4], 1
    %s457 = scalar_lea.sflag [#allocation4], 1
    %458 = vsyncpa %s457, 1

</llo_original>
